<compile_context>
chip_gen: v7x
topology: tpu7x:2x2x1
jax: 0.10.0
libtpu: 0.0.40
codegen_flags: <defaults>
</compile_context>

<pallas_src>
import functools

import jax
import jax.numpy as jnp
from jax.experimental import pallas as pl
from jax.experimental.pallas import tpu as pltpu

_LANE = 128          # lane width (last dim)
_SUBLANE_BF16 = 16   # bf16 sublane packing (second-to-last dim)
_NEG_INF = -1e30     # Python literal -> kernel immediate (NOT a captured jnp constant)


def _round_up(n, m):
    return ((n + m - 1) // m) * m


def _cost_estimate(b, s, h, a, *, in_bytes=2, out_bytes=2):
    flops = 2 * b * (s * h + h * a)
    transcendentals = b * a + b                       # exp per padded logit + recip per row
    bytes_accessed = (b * s * in_bytes                # x (bf16)
                      + s * h * in_bytes + h * 4      # w1 (bf16), b1 (f32)
                      + h * a * in_bytes + a * 4      # w2 (bf16), b2 (f32)
                      + b * a * out_bytes)            # probs (bf16)
    return pl.CostEstimate(flops=flops, transcendentals=transcendentals,
                           bytes_accessed=bytes_accessed)


def _vmem_limit_bytes(tb, state_dim, h_pad, a_pad):
    """Conservative scoped-VMEM budget: double-buffered tiles + resident weights
    + f32 intermediates, clamped to [32 MiB, 64 MiB] (v7x physical VMEM = 64 MiB)."""
    bf16, f32 = 2, 4
    x_tile = tb * _round_up(state_dim, _LANE) * bf16        # lane-padded physical footprint
    out_tile = tb * a_pad * bf16
    w_bytes = (_round_up(state_dim, _SUBLANE_BF16) * h_pad + h_pad * a_pad) * bf16
    bias_bytes = 8 * (h_pad + a_pad) * f32                  # sublane-padded
    interm = tb * h_pad * f32 + 2 * tb * a_pad * f32        # h, logits/e live ranges
    est = 2 * (x_tile + out_tile + w_bytes + bias_bytes) + interm
    return int(min(max(2 * est, 32 << 20), 64 << 20))


def _policy_net_kernel(x_ref, w1_ref, b1_ref, w2_ref, b2_ref, out_ref, *, action_dim):
    """softmax(relu(x @ w1 + b1) @ w2 + b2) for one (tb, *) batch tile.

    x/w1/w2 arrive as bf16 (pre-cast in the wrapper) -> MXU operands.
    Accumulation + epilogue stay f32; only the final store casts to out dtype.
    """
    # fc1 + ReLU
    h = jnp.dot(x_ref[...], w1_ref[...], preferred_element_type=jnp.float32) + b1_ref[...]
    h = jnp.maximum(h, 0.0)

    # fc2
    logits = jnp.dot(h.astype(jnp.bfloat16), w2_ref[...],
                     preferred_element_type=jnp.float32) + b2_ref[...]

    # Mask lanes beyond the true action_dim (lane padding) so they contribute
    # exp(-big) ~= 0 to the softmax denominator.
    a_pad = logits.shape[-1]
    if a_pad != action_dim:
        lane = jax.lax.broadcasted_iota(jnp.int32, logits.shape, 1)
        logits = jnp.where(lane < action_dim, logits, _NEG_INF)

    # Numerically stable softmax over the padded, lane-dense last axis.
    m = jnp.max(logits, axis=-1, keepdims=True)
    e = jnp.exp(logits - m)
    denom = jnp.sum(e, axis=-1, keepdims=True)
    out_ref[...] = (e * pl.reciprocal(denom, approx=True)).astype(out_ref.dtype)


def prepare_params(w1, b1, w2, b2):
    """Pad weights lane-dense (128) and cast to bf16 ONCE, outside the per-call path.

    Padded weight/bias entries are zero, so they are exact no-ops through
    fc1/fc2.  Biases stay f32 (epilogue precision, v5e-safe).
    """
    state_dim, hidden_dim = w1.shape
    action_dim = w2.shape[1]
    h_pad = _round_up(hidden_dim, _LANE)
    a_pad = _round_up(action_dim, _LANE)
    f32 = jnp.float32
    w1_p = jnp.pad(w1.astype(f32), ((0, 0), (0, h_pad - hidden_dim))).astype(jnp.bfloat16)
    b1_p = jnp.pad(b1.astype(f32).reshape(1, -1), ((0, 0), (0, h_pad - hidden_dim)))
    w2_p = jnp.pad(w2.astype(f32), ((0, h_pad - hidden_dim), (0, a_pad - action_dim))
                   ).astype(jnp.bfloat16)
    b2_p = jnp.pad(b2.astype(f32).reshape(1, -1), ((0, 0), (0, a_pad - action_dim)))
    return dict(w1=w1_p, b1=b1_p, w2=w2_p, b2=b2_p,
                state_dim=state_dim, hidden_dim=hidden_dim, action_dim=action_dim,
                h_pad=h_pad, a_pad=a_pad)


def policy_net_forward(x, params, *, block_batch=2048, small_batch_max=256):
    """softmax(relu(x @ w1 + b1) @ w2 + b2, axis=1) via a Pallas TPU kernel."""
    batch, state_dim = x.shape
    assert state_dim == params["state_dim"]
    h_pad, a_pad = params["h_pad"], params["a_pad"]
    action_dim = params["action_dim"]
    w1_p, b1_p, w2_p, b2_p = params["w1"], params["b1"], params["w2"], params["b2"]

    kernel = functools.partial(_policy_net_kernel, action_dim=action_dim)
    x_bf = x.astype(jnp.bfloat16)

    if batch <= small_batch_max:
        # Single-shot: no grid, full-array VMEM blocks -> no pipeline machinery.
        b_pad = _round_up(batch, _SUBLANE_BF16)
        x_p = jnp.pad(x_bf, ((0, b_pad - batch), (0, 0)))
        out_p = pl.pallas_call(
            kernel,
            out_shape=jax.ShapeDtypeStruct((b_pad, a_pad), jnp.bfloat16),
            in_specs=[pl.BlockSpec(memory_space=pltpu.MemorySpace.VMEM)] * 5,
            out_specs=pl.BlockSpec(memory_space=pltpu.MemorySpace.VMEM),
            compiler_params=pltpu.CompilerParams(
                vmem_limit_bytes=_vmem_limit_bytes(b_pad, state_dim, h_pad, a_pad)),
            cost_estimate=_cost_estimate(b_pad, state_dim, h_pad, a_pad),
        )(x_p, w1_p, b1_p, w2_p, b2_p)
    else:
        # Batch-tiled grid: >= 2 "parallel" tiles so v7x can shard across both
        # TensorCores; tile size amortizes per-step overhead with minimal padding.
        num_tiles = max(2, pl.cdiv(batch, block_batch))
        tb = _round_up(pl.cdiv(batch, num_tiles), _SUBLANE_BF16)
        b_pad = _round_up(batch, tb)
        x_p = jnp.pad(x_bf, ((0, b_pad - batch), (0, 0)))
        out_p = pl.pallas_call(
            kernel,
            out_shape=jax.ShapeDtypeStruct((b_pad, a_pad), jnp.bfloat16),
            grid=(b_pad // tb,),
            in_specs=[
                pl.BlockSpec((tb, state_dim), lambda i: (i, 0)),
                pl.BlockSpec((state_dim, h_pad), lambda i: (0, 0)),
                pl.BlockSpec((1, h_pad), lambda i: (0, 0)),
                pl.BlockSpec((h_pad, a_pad), lambda i: (0, 0)),
                pl.BlockSpec((1, a_pad), lambda i: (0, 0)),
            ],
            out_specs=pl.BlockSpec((tb, a_pad), lambda i: (i, 0)),
            compiler_params=pltpu.CompilerParams(
                dimension_semantics=("parallel",),
                vmem_limit_bytes=_vmem_limit_bytes(tb, state_dim, h_pad, a_pad)),
            cost_estimate=_cost_estimate(b_pad, state_dim, h_pad, a_pad),
        )(x_p, w1_p, b1_p, w2_p, b2_p)

    # Slice away batch / action-lane padding (tiny with the bf16 slab) and
    # return f32 probabilities to match the PyTorch module's output dtype.
    return out_p[:batch, :action_dim].astype(jnp.float32)


def policy_net_reference(x, w1, b1, w2, b2):
    """Plain-JAX reference matching the kernel's bf16-MXU / f32-epilogue pipeline."""
    xm, w1m, w2m = (a.astype(jnp.bfloat16) for a in (x, w1, w2))
    h = jnp.maximum(
        jnp.dot(xm, w1m, preferred_element_type=jnp.float32) + b1.reshape(1, -1), 0.0)
    logits = jnp.dot(h.astype(jnp.bfloat16), w2m,
                     preferred_element_type=jnp.float32) + b2.reshape(1, -1)
    return jax.nn.softmax(logits, axis=1)


def init_params(key, state_dim, hidden_dim, action_dim):
    # Mimics PyTorch nn.Linear default init: U(-1/sqrt(fan_in), 1/sqrt(fan_in)).
    k1, k2, k3, k4 = jax.random.split(key, 4)
    bound1 = float(state_dim) ** -0.5
    bound2 = float(hidden_dim) ** -0.5
    w1 = jax.random.uniform(k1, (state_dim, hidden_dim), jnp.float32, -bound1, bound1)
    b1 = jax.random.uniform(k2, (hidden_dim,), jnp.float32, -bound1, bound1)
    w2 = jax.random.uniform(k3, (hidden_dim, action_dim), jnp.float32, -bound2, bound2)
    b2 = jax.random.uniform(k4, (action_dim,), jnp.float32, -bound2, bound2)
    return w1, b1, w2, b2


if __name__ == "__main__":
    # CartPole-ish sizes: state_dim=4, hidden_dim=32, action_dim=2
    state_dim, hidden_dim, action_dim = 4, 32, 2

    key = jax.random.PRNGKey(0)
    kx, kp, kb = jax.random.split(key, 3)
    w1, b1, w2, b2 = init_params(kp, state_dim, hidden_dim, action_dim)
    params = prepare_params(w1, b1, w2, b2)   # pad + bf16-cast once, reused below

    # --- small batch: exercises the no-grid, full-VMEM path ---
    batch_small = 2
    x_small = jax.random.normal(kx, (batch_small, state_dim), jnp.float32)
    out_small = jax.block_until_ready(policy_net_forward(x_small, params))
    ref_small = policy_net_reference(x_small, w1, b1, w2, b2)
    assert out_small.shape == (batch_small, action_dim)
    assert jnp.allclose(out_small, ref_small, atol=1e-2, rtol=1e-2)
    assert jnp.allclose(jnp.sum(out_small, axis=1), 1.0, atol=1e-2)

    # --- large batch: exercises the batch-tiled "parallel" grid path (>=2 tiles) ---
    batch_large = 1000   # not a multiple of the tile -> also checks padding/slicing
    x_large = jax.random.normal(kb, (batch_large, state_dim), jnp.float32)
    out_large = jax.block_until_ready(policy_net_forward(x_large, params))
    ref_large = policy_net_reference(x_large, w1, b1, w2, b2)
    assert out_large.shape == (batch_large, action_dim)
    assert jnp.allclose(out_large, ref_large, atol=1e-2, rtol=1e-2)
    assert jnp.allclose(jnp.sum(out_large, axis=1), 1.0, atol=1e-2)

    print("KERNEL_OK")
</pallas_src>

<mosaic_0001>
module attributes {stable_mosaic.version = 11 : i64} {
  func.func @_policy_net_kernel(%arg0: memref<16x4xbf16, #tpu.memory_space<vmem>>, %arg1: memref<4x128xbf16, #tpu.memory_space<vmem>>, %arg2: memref<1x128xf32, #tpu.memory_space<vmem>>, %arg3: memref<128x128xbf16, #tpu.memory_space<vmem>>, %arg4: memref<1x128xf32, #tpu.memory_space<vmem>>, %arg5: memref<16x128xbf16, #tpu.memory_space<vmem>>) attributes {dimension_semantics = [], scalar_prefetch = 0 : i64, scratch_operands = 0 : i64, tpu.core_type = #tpu.core_type<tc>} {
    %c0 = arith.constant 0 : index
    %c0_0 = arith.constant 0 : index
    %0 = vector.load %arg0[%c0, %c0_0] : memref<16x4xbf16, #tpu.memory_space<vmem>>, vector<16x4xbf16>
    %c0_1 = arith.constant 0 : index
    %c0_2 = arith.constant 0 : index
    %1 = vector.load %arg1[%c0_1, %c0_2] : memref<4x128xbf16, #tpu.memory_space<vmem>>, vector<4x128xbf16>
    %cst = arith.constant dense<0.000000e+00> : vector<16x128xf32>
    %2 = tpu.matmul %0, %1, %cst {dimension_numbers = #tpu.dot_dimension_numbers<[1], [0], [0], [1], [0, 0, 1, 1], [], []>} : vector<16x4xbf16>, vector<4x128xbf16>, vector<16x128xf32> -> vector<16x128xf32>
    %c0_3 = arith.constant 0 : index
    %c0_4 = arith.constant 0 : index
    %3 = vector.load %arg2[%c0_3, %c0_4] : memref<1x128xf32, #tpu.memory_space<vmem>>, vector<1x128xf32>
    %4 = vector.broadcast %3 : vector<1x128xf32> to vector<16x128xf32>
    %5 = arith.addf %2, %4 : vector<16x128xf32>
    %cst_5 = arith.constant 0.000000e+00 : f32
    %6 = vector.broadcast %cst_5 : f32 to vector<16x128xf32>
    %7 = arith.maximumf %5, %6 : vector<16x128xf32>
    %8 = arith.truncf %7 : vector<16x128xf32> to vector<16x128xbf16>
    %c0_6 = arith.constant 0 : index
    %c0_7 = arith.constant 0 : index
    %9 = vector.load %arg3[%c0_6, %c0_7] : memref<128x128xbf16, #tpu.memory_space<vmem>>, vector<128x128xbf16>
    %cst_8 = arith.constant dense<0.000000e+00> : vector<16x128xf32>
    %10 = tpu.matmul %8, %9, %cst_8 {dimension_numbers = #tpu.dot_dimension_numbers<[1], [0], [0], [1], [0, 0, 1, 1], [], []>} : vector<16x128xbf16>, vector<128x128xbf16>, vector<16x128xf32> -> vector<16x128xf32>
    %c0_9 = arith.constant 0 : index
    %c0_10 = arith.constant 0 : index
    %11 = vector.load %arg4[%c0_9, %c0_10] : memref<1x128xf32, #tpu.memory_space<vmem>>, vector<1x128xf32>
    %12 = vector.broadcast %11 : vector<1x128xf32> to vector<16x128xf32>
    %13 = arith.addf %10, %12 : vector<16x128xf32>
    %14 = tpu.iota {dimensions = array<i32: 1>} : vector<16x128xi32>
    %c2_i32 = arith.constant 2 : i32
    %15 = vector.broadcast %c2_i32 : i32 to vector<16x128xi32>
    %16 = arith.cmpi slt, %14, %15 : vector<16x128xi32>
    %cst_11 = arith.constant -1.000000e+30 : f32
    %17 = vector.broadcast %cst_11 : f32 to vector<16x128xf32>
    %18 = arith.select %16, %13, %17 : vector<16x128xi1>, vector<16x128xf32>
    %cst_12 = arith.constant dense<0xFF800000> : vector<16xf32>
    %19 = vector.multi_reduction <maximumf>, %18, %cst_12 [1] : vector<16x128xf32> to vector<16xf32>
    %20 = vector.shape_cast %19 : vector<16xf32> to vector<16x1xf32>
    %21 = vector.broadcast %20 : vector<16x1xf32> to vector<16x128xf32>
    %22 = arith.subf %18, %21 : vector<16x128xf32>
    %23 = math.exp %22 : vector<16x128xf32>
    %cst_13 = arith.constant dense<0.000000e+00> : vector<16xf32>
    %24 = vector.multi_reduction <add>, %23, %cst_13 [1] : vector<16x128xf32> to vector<16xf32>
    %25 = vector.shape_cast %24 : vector<16xf32> to vector<16x1xf32>
    %26 = tpu.reciprocal %25 {approx = true} : vector<16x1xf32> -> vector<16x1xf32>
    %27 = vector.broadcast %26 : vector<16x1xf32> to vector<16x128xf32>
    %28 = arith.mulf %23, %27 : vector<16x128xf32>
    %29 = arith.truncf %28 : vector<16x128xf32> to vector<16x128xbf16>
    %c0_14 = arith.constant 0 : index
    %c0_15 = arith.constant 0 : index
    %30 = vector.load %arg5[%c0_14, %c0_15] : memref<16x128xbf16, #tpu.memory_space<vmem>>, vector<16x128xbf16>
    tpu.vector_store %arg5[%c0_14, %c0_15], %29 {strides = array<i32>} : memref<16x128xbf16, #tpu.memory_space<vmem>>, vector<16x128xbf16>,
    return
  }
}

</mosaic_0001>

<llo_original>
// kernel: tpu_custom_call.1
$region0: #{tpu_custom_call.1}
  #allocation0 [shape = 'u32[]', space=smem, size = 0x4, offset = 0x4, fixed_abs, tag = 'smem constant byte address 0x4 - core index']
  #allocation1 [shape = 'u32[144,128]{1,0:T(1,128)}', space=vmem, size = 0x12000, scoped, tag = 'internal scratch']
  %s0 = inlined_call_operand.vmem [shape: bf16[16,4], index: 0, kind: input, shape index: {}]
  %s1 = inlined_call_operand.vmem [shape: bf16[4,128], index: 1, kind: input, shape index: {}]
  %s2 = inlined_call_operand.vmem [shape: f32[1,128], index: 2, kind: input, shape index: {}]
  %s3 = inlined_call_operand.hbm [shape: bf16[128,128], index: 3, kind: input, shape index: {}]
  %s4 = inlined_call_operand.vmem [shape: f32[1,128], index: 4, kind: input, shape index: {}]
  %s5 = inlined_call_operand.hbm [shape: bf16[16,128], index: 5, kind: output, shape index: {}]
  %s6 = sld [smem:[#allocation0]]
  $region34: #{tpu_custom_call.1} parent=0
    _
  %s8 = ssub.s32 1, %s6
  %s9 = scalar_select 0, %s8, %s6
  $region1: #{tpu_custom_call.1} parent=0
    #allocation2 [shape = 'u8[32768]{0}', space=vmem, size = 0x8000, scoped, tag = 'input window, operand 3, single buffered']
    #allocation3 [shape = 's32[1]{0}', space=sflag, size = 0x4, scoped, tag = 'scoped memory for tpu_custom_call.1']
    #allocation4 [shape = 's32[1]{0}', space=sflag, size = 0x4, scoped, tag = 'scoped memory for tpu_custom_call.1']
    #allocation5 [shape = 'u8[4096]{0}', space=vmem, size = 0x1000, scoped, tag = 'output window, operand 0, single buffered']
    %10 = vsyncpa [#allocation3], 0
    %11 = vsyncpa [#allocation4], 0
    // Predicated region
    $region2: #{tpu_custom_call.1} parent=1 // pred_check
      _
    $region3: #{tpu_custom_call.1} parent=1 // pred_check_branch
      %13 = sbr.rel (0) target = $region5
    $region4: #{tpu_custom_call.1} parent=1 // pred_region
      _
    $region5: #{tpu_custom_call.1} parent=1 // pred_fallthru
      _
    // Predicated region
    $region6: #{tpu_custom_call.1} parent=1 // pred_check
      _
    $region7: #{tpu_custom_call.1} parent=1 // pred_check_branch
      %15 = sbr.rel (0) target = $region9
    $region8: #{tpu_custom_call.1} parent=1 // pred_region
      _
    $region9: #{tpu_custom_call.1} parent=1 // pred_fallthru
      _
    // Predicated region
    $region10: #{tpu_custom_call.1} parent=1 // pred_check
      _
    $region11: #{tpu_custom_call.1} parent=1 // pred_check_branch
      %17 = sbr.rel (0) target = $region13
    $region12: #{tpu_custom_call.1} parent=1 // pred_region
      _
    $region13: #{tpu_custom_call.1} parent=1 // pred_fallthru
      _
    // Predicated region
    $region14: #{tpu_custom_call.1} parent=1 // pred_check
      _
    $region15: #{tpu_custom_call.1} parent=1 // pred_check_branch
      %19 = sbr.rel (0) target = $region17
    $region16: #{tpu_custom_call.1} parent=1 // pred_region
      %s21 = ssub.s32 1024, 1024
      %22 = vsyncadd [#allocation3], %s21
      %s23 = sshll.u32 [#allocation2], 4
      %s24 = int_to_ptr.vmem [resolvable:$true] %s23
      %29 = dma.hbm_to_vmem [thread:$0]  %s3, 1024, %s24, [#allocation3], 64, 64, 4
    $region17: #{tpu_custom_call.1} parent=1 // pred_fallthru
      _
    // Predicated region
    $region18: #{tpu_custom_call.1} parent=1 // pred_check
      _
    $region19: #{tpu_custom_call.1} parent=1 // pred_check_branch
      %31 = sbr.rel (0) target = $region21
    $region20: #{tpu_custom_call.1} parent=1 // pred_region
      _
    $region21: #{tpu_custom_call.1} parent=1 // pred_fallthru
      _
    // Predicated region
    $region22: #{tpu_custom_call.1} parent=1 // pred_check
      _
    $region23: #{tpu_custom_call.1} parent=1 // pred_check_branch
      %33 = sbr.rel (0) target = $region25
    $region24: #{tpu_custom_call.1} parent=1 // pred_region
      %34 = dma.done [#allocation3], 1024
    $region25: #{tpu_custom_call.1} parent=1 // pred_fallthru
      _
    %v36 = vld [vmem:[%s0] sm:$0xf]
    %v37 = vld [vmem:[%s0 + $0x4] sm:$0xf]
    %v38 = vld [vmem:[%s1] sm:$0x3]
    %v39 = vld [vmem:[%s2] sm:$0x1]
    %v41 = vlaneseq
    %v42 = vshrl.u32 %v41, 7
    %v43 = vsub.s32 0, %v42
    %v44 = vrot.slane %v39, %v43
    %v48 = vunpack.c.l.b16 %v36
    %v49 = vunpack.c.l.b16 %v37
    %v50 = vpack.c.b16 %v49, %v48
    %vm51 = vcmask 31744
    %v53 = vsel %vm51, %v50, 0
    %vm55 = vcmask 1041408
    %v57 = vsel %vm55, %v38, 0
    %59 = vmatprep.subr.bf16.mxu0 0
    %60 = vmatpush1.bf16.msra.mxu0 %v57
    %61 = vmatprep.subr.bf16.mxu0 0
    %62 = vmatpush1.bf16.msra.mxu0 0
    %63 = vmatprep.subr.bf16.mxu0 0
    %64 = vmatpush1.bf16.msra.mxu0 0
    %65 = vmatprep.subr.bf16.mxu0 0
    %66 = vmatpush1.bf16.msra.mxu0 0
    %67 = vmatprep.subr.bf16.mxu0 0
    %68 = vmatpush1.bf16.msra.mxu0 0
    %69 = vmatprep.subr.bf16.mxu0 0
    %70 = vmatpush1.bf16.msra.mxu0 0
    %71 = vmatprep.subr.bf16.mxu0 0
    %72 = vmatpush1.bf16.msra.mxu0 0
    %73 = vmatprep.subr.bf16.mxu0 0
    %74 = vmatpush1.bf16.msra.mxu0 0
    %75 = vmatprep.subr.bf16.mxu0 0
    %76 = vmatpush1.bf16.msra.mxu0 0
    %77 = vmatprep.subr.bf16.mxu0 0
    %78 = vmatpush1.bf16.msra.mxu0 0
    %79 = vmatprep.subr.bf16.mxu0 0
    %80 = vmatpush1.bf16.msra.mxu0 0
    %81 = vmatprep.subr.bf16.mxu0 0
    %82 = vmatpush1.bf16.msra.mxu0 0
    %83 = vmatprep.subr.bf16.mxu0 0
    %84 = vmatpush1.bf16.msra.mxu0 0
    %85 = vmatprep.subr.bf16.mxu0 0
    %86 = vmatpush1.bf16.msra.mxu0 0
    %87 = vmatprep.subr.bf16.mxu0 0
    %88 = vmatpush1.bf16.msra.mxu0 0
    %89 = vmatprep.subr.bf16.mxu0 0
    %90 = vmatpush1.bf16.msra.mxu0 0
    %91 = vmatprep.mubr.bf16.mxu0 0
    %92 = vmatmul.mubr.bf16.gmra.mrb[0].mxu0 %v53
    %v93 = vpop.f32.mrb[0].mxu0
    %v94 = vadd.f32 %v44, %v93
    %v95 = vpop.f32.mrb[0].mxu0
    %v96 = vpop.f32.mrb[0].mxu0
    %v97 = vadd.f32 %v44, %v96
    %v98 = vpop.f32.mrb[0].mxu0
    %99 = vdwg.mxu0
    %v100 = vmax.f32 %v94, 0.0
    %v101 = vmax.f32 %v97, 0.0
    %v102 = vpack.c.bf16 %v101, %v100
    %v103 = vld [vmem:[#allocation2] sm:$0xf]
    %v104 = vld [vmem:[#allocation2 + $0x4] sm:$0xf]
    %v105 = vld [vmem:[#allocation2 + $0x8] sm:$0xf]
    %v106 = vld [vmem:[#allocation2 + $0xc] sm:$0xf]
    %v107 = vld [vmem:[#allocation2 + $0x10] sm:$0xf]
    %v108 = vld [vmem:[#allocation2 + $0x14] sm:$0xf]
    %v109 = vld [vmem:[#allocation2 + $0x18] sm:$0xf]
    %v110 = vld [vmem:[#allocation2 + $0x1c] sm:$0xf]
    %v111 = vld [vmem:[#allocation2 + $0x20] sm:$0xf]
    %v112 = vld [vmem:[#allocation2 + $0x24] sm:$0xf]
    %v113 = vld [vmem:[#allocation2 + $0x28] sm:$0xf]
    %v114 = vld [vmem:[#allocation2 + $0x2c] sm:$0xf]
    %v115 = vld [vmem:[#allocation2 + $0x30] sm:$0xf]
    %v116 = vld [vmem:[#allocation2 + $0x34] sm:$0xf]
    %v117 = vld [vmem:[#allocation2 + $0x38] sm:$0xf]
    %v118 = vld [vmem:[#allocation2 + $0x3c] sm:$0xf]
    %v119 = vld [vmem:[%s4] sm:$0x1]
    %v121 = vlaneseq
    %v122 = vshrl.u32 %v121, 7
    %v123 = vsub.s32 0, %v122
    %v124 = vrot.slane %v119, %v123
    %v142 = vunpack.c.l.b16 %v103
    %v143 = vunpack.c.l.b16 %v104
    %v144 = vunpack.c.l.b16 %v105
    %v145 = vunpack.c.l.b16 %v106
    %v146 = vunpack.c.l.b16 %v107
    %v147 = vunpack.c.l.b16 %v108
    %v148 = vunpack.c.l.b16 %v109
    %v149 = vunpack.c.l.b16 %v110
    %v150 = vunpack.c.l.b16 %v111
    %v151 = vunpack.c.l.b16 %v112
    %v152 = vunpack.c.l.b16 %v113
    %v153 = vunpack.c.l.b16 %v114
    %v154 = vunpack.c.l.b16 %v115
    %v155 = vunpack.c.l.b16 %v116
    %v156 = vunpack.c.l.b16 %v117
    %v157 = vunpack.c.l.b16 %v118
    %v158 = vpack.c.b16 %v143, %v142
    %v159 = vpack.c.b16 %v145, %v144
    %v160 = vpack.c.b16 %v147, %v146
    %v161 = vpack.c.b16 %v149, %v148
    %v162 = vpack.c.b16 %v151, %v150
    %v163 = vpack.c.b16 %v153, %v152
    %v164 = vpack.c.b16 %v155, %v154
    %v165 = vpack.c.b16 %v157, %v156
    %174 = vmatprep.subr.bf16.mxu0 0
    %175 = vmatpush1.bf16.msra.mxu0 %v158
    %176 = vmatprep.subr.bf16.mxu0 0
    %177 = vmatpush1.bf16.msra.mxu0 %v159
    %178 = vmatprep.subr.bf16.mxu0 0
    %179 = vmatpush1.bf16.msra.mxu0 %v160
    %180 = vmatprep.subr.bf16.mxu0 0
    %181 = vmatpush1.bf16.msra.mxu0 %v161
    %182 = vmatprep.subr.bf16.mxu0 0
    %183 = vmatpush1.bf16.msra.mxu0 %v162
    %184 = vmatprep.subr.bf16.mxu0 0
    %185 = vmatpush1.bf16.msra.mxu0 %v163
    %186 = vmatprep.subr.bf16.mxu0 0
    %187 = vmatpush1.bf16.msra.mxu0 %v164
    %188 = vmatprep.subr.bf16.mxu0 0
    %189 = vmatpush1.bf16.msra.mxu0 %v165
    %190 = vmatprep.subr.bf16.mxu0 0
    %191 = vmatpush1.bf16.msra.mxu0 0
    %192 = vmatprep.subr.bf16.mxu0 0
    %193 = vmatpush1.bf16.msra.mxu0 0
    %194 = vmatprep.subr.bf16.mxu0 0
    %195 = vmatpush1.bf16.msra.mxu0 0
    %196 = vmatprep.subr.bf16.mxu0 0
    %197 = vmatpush1.bf16.msra.mxu0 0
    %198 = vmatprep.subr.bf16.mxu0 0
    %199 = vmatpush1.bf16.msra.mxu0 0
    %200 = vmatprep.subr.bf16.mxu0 0
    %201 = vmatpush1.bf16.msra.mxu0 0
    %202 = vmatprep.subr.bf16.mxu0 0
    %203 = vmatpush1.bf16.msra.mxu0 0
    %204 = vmatprep.subr.bf16.mxu0 0
    %205 = vmatpush1.bf16.msra.mxu0 0
    %206 = vmatprep.mubr.bf16.mxu0 0
    %207 = vmatmul.mubr.bf16.gmra.mrb[0].mxu0 %v102
    %v208 = vpop.f32.mrb[0].mxu0
    %v209 = vadd.f32 %v124, %v208
    %v210 = vpop.f32.mrb[0].mxu0
    %v211 = vpop.f32.mrb[0].mxu0
    %v212 = vadd.f32 %v124, %v211
    %v213 = vpop.f32.mrb[0].mxu0
    %214 = vdwg.mxu0
    %v215 = vlaneseq
    %v216 = vand.u32 %v215, 127
    %vm217 = vcmp.lt.s32.totalorder %v216, 2
    %v218 = vsel %vm217, %v209, -1e+30
    %v219 = vsel %vm217, %v212, -1e+30
    %220 = vmax.xlane.f32.xlu0 %v218
    %v221 = vpop.xlane.xlu0 %220
    %222 = vmax.xlane.f32.xlu0 %v219
    %v223 = vpop.xlane.xlu0 %222
    %v224 = vsub.f32 %v218, %v221
    %v225 = vsub.f32 %v219, %v223
    %v226 = vmul.f32 %v224, 1.442695
    %v227 = vpow.pop %v226
    %v228 = vmul.f32 %v225, 1.442695
    %v229 = vpow.pop %v228
    %230 = vadd.xlane.f32.xlu0 %v227
    %v231 = vpop.xlane.xlu0 %230
    %232 = vadd.xlane.f32.xlu0 %v229
    %v233 = vpop.xlane.xlu0 %232
    %v234 = vrcp.pop %v231
    %v235 = vrcp.pop %v233
    %v236 = vmul.f32 %v227, %v234
    %v237 = vmul.f32 %v229, %v235
    %v238 = vpack.c.bf16 %v237, %v236
    %v240 = vunpack.c.l.b16 %v238
    %v241 = vunpack.c.h.b16 %v238
    %v242 = vpack.c.b16 %v240, %v240
    %v243 = vpack.c.b16 %v241, %v241
    %246 = vst [vmem:[#allocation5] sm:$0xf] %v242
    %247 = vst [vmem:[#allocation5 + $0x4] sm:$0xf] %v243
    // Predicated region
    $region26: #{tpu_custom_call.1} parent=1 // pred_check
      _
    $region27: #{tpu_custom_call.1} parent=1 // pred_check_branch
      %249 = sbr.rel (0) target = $region29
    $region28: #{tpu_custom_call.1} parent=1 // pred_region
      %s251 = ssub.s32 128, 128
      %252 = vsyncadd [#allocation4], %s251
      %s253 = sshll.u32 [#allocation5], 4
      %s254 = int_to_ptr.vmem [resolvable:$true] %s253
      %259 = dma.vmem_to_hbm [thread:$0]  %s254, 128, %s5, [#allocation4], 64, 64, 4
    $region29: #{tpu_custom_call.1} parent=1 // pred_fallthru
      _
    // Predicated region
    $region30: #{tpu_custom_call.1} parent=1 // pred_check
      _
    $region31: #{tpu_custom_call.1} parent=1 // pred_check_branch
      %261 = sbr.rel (0) target = $region33
    $region32: #{tpu_custom_call.1} parent=1 // pred_region
      %262 = dma.done [#allocation4], 128
    $region33: #{tpu_custom_call.1} parent=1 // pred_fallthru
      _
    %263 = vsyncpa [#allocation3], 1
    %264 = vsyncpa [#allocation4], 1

</llo_original>
